<compile_context>
chip_gen: v7x
topology: tpu7x:2x2x1
jax: 0.10.0
libtpu: 0.0.40
codegen_flags: <defaults>
</compile_context>

<pallas_src>
import functools
import math

import jax
import jax.numpy as jnp
from jax import lax
from jax.experimental import pallas as pl
from jax.experimental.pallas import tpu as pltpu


def _ext_actnorm_kernel(z_ref, x_ref, w_ref, b_ref, ldj_in_ref, *rest,
                        c_in, seq_len, tile_s, reverse, use_mask):
    """One (batch, seq-tile) grid step.

    z_ref       : (1, tile_s, c_in)   activations tile
    x_ref       : (1, tile_s, c_ext)  external-input tile
    w_ref       : (2*c_in, c_ext)     pred-net weight (VMEM-resident)
    b_ref       : (1, 2*c_in)         pred-net bias   (VMEM-resident)
    ldj_in_ref  : (1, 1, 1)           incoming ldj for this batch element
    [mask_ref]  : (1, tile_s, mc)     optional channel_padding_mask tile
    z_out_ref   : (1, tile_s, c_in)
    ldj_out_ref : (1, 1, 1)           revisited accumulator across seq tiles
    """
    if use_mask:
        mask_ref, z_out_ref, ldj_out_ref = rest
    else:
        z_out_ref, ldj_out_ref = rest

    s_idx = pl.program_id(1)

    # ldj accumulator lives in the (revisited) output block across the seq axis.
    @pl.when(s_idx == 0)
    def _init():
        ldj_out_ref[...] = ldj_in_ref[...].astype(jnp.float32)

    # pred_net on the MXU: contract the last axis of both operands so the
    # PyTorch-layout (2*c_in, c_ext) weight is used as-is (no transpose).
    nn_out = lax.dot_general(
        x_ref[0], w_ref[...],
        dimension_numbers=(((1,), (1,)), ((), ())),
        preferred_element_type=jnp.float32)                  # (tile_s, 2*c_in)
    nn_out = nn_out + b_ref[...].astype(jnp.float32)

    t = nn_out[:, :c_in]                                     # additive bias
    log_s = jnp.tanh(nn_out[:, c_in:])                       # log-scales (EUP)

    z = z_ref[0].astype(jnp.float32)
    if not reverse:
        z_new = (z + t) * jnp.exp(log_s)
    else:
        z_new = z * jnp.exp(-log_s) - t
    z_out_ref[0] = z_new.astype(z_out_ref.dtype)

    # ldj contribution; mask out padded rows of a ragged last seq tile.
    row = lax.broadcasted_iota(jnp.int32, (tile_s, 1), 0) + s_idx * tile_s
    valid = (row < seq_len).astype(jnp.float32)               # (tile_s, 1)
    contrib = log_s * valid
    if use_mask:
        contrib = contrib * mask_ref[0].astype(jnp.float32)
    tile_ldj = jnp.sum(contrib)
    if reverse:
        tile_ldj = -tile_ldj
    ldj_out_ref[...] = ldj_out_ref[...] + tile_ldj


def _choose_seq_tile(seq_len, row_bytes):
    """Largest seq tile (multiple of 8) whose double-buffered footprint stays
    within a ~8 MiB pipeline budget; full seq length if it already fits."""
    budget = 8 << 20
    rows = max(8, budget // max(2 * row_bytes, 1))
    if rows >= seq_len:
        return seq_len
    return max(8, min(1024, (rows // 8) * 8))


def ext_actnorm_flow(z, weight, bias, ldj=None, reverse=False,
                     ext_input=None, channel_padding_mask=None):
    """Functional equivalent of ExtActNormFlow.forward with a single-Linear
    pred_net (weight: (2*c_in, c_ext) PyTorch layout, bias: (2*c_in,)).

    Returns (z_out, ldj) exactly like the PyTorch module.
    """
    # TODO(synk): make_unique (torch.unique dedup of ext_input) not implemented.
    # TODO(synk): layer_share_dict side-channel update not implemented.
    B, S, c_in = z.shape
    if ldj is None:
        ldj = jnp.zeros((B,), z.dtype)

    if ext_input is None:
        # Matches the PyTorch default path: bias = scales = 0 -> identity.
        print('[!] WARNING: External input in ExtActNormFlow is None. '
              'Using default params...')
        return z, ldj

    two_c, c_ext = weight.shape
    assert two_c == 2 * c_in, "pred_net must output 2*c_in channels"
    assert ext_input.shape == (B, S, c_ext)

    use_mask = channel_padding_mask is not None
    mask3 = None
    if use_mask:
        m = channel_padding_mask
        if m.ndim == 2:
            m = m[..., None]
        assert m.shape[:2] == (B, S) and m.shape[-1] in (1, c_in)
        mask3 = m.astype(z.dtype)

    itemsize = z.dtype.itemsize
    row_bytes = (2 * c_in * itemsize
                 + c_ext * ext_input.dtype.itemsize
                 + (mask3.shape[-1] * mask3.dtype.itemsize if use_mask else 0))
    tile_s = _choose_seq_tile(S, row_bytes)
    num_s = pl.cdiv(S, tile_s)

    b2d = bias.reshape(1, two_c)
    ldj3 = ldj.reshape(B, 1, 1).astype(jnp.float32)

    in_specs = [
        pl.BlockSpec((1, tile_s, c_in), lambda b, s: (b, s, 0)),    # z
        pl.BlockSpec((1, tile_s, c_ext), lambda b, s: (b, s, 0)),   # ext_input
        pl.BlockSpec((two_c, c_ext), lambda b, s: (0, 0)),          # weight
        pl.BlockSpec((1, two_c), lambda b, s: (0, 0)),              # bias
        pl.BlockSpec((1, 1, 1), lambda b, s: (b, 0, 0)),            # ldj_in
    ]
    inputs = [z, ext_input, weight, b2d, ldj3]
    if use_mask:
        mc = mask3.shape[-1]
        in_specs.append(pl.BlockSpec((1, tile_s, mc), lambda b, s: (b, s, 0)))
        inputs.append(mask3)

    out_specs = [
        pl.BlockSpec((1, tile_s, c_in), lambda b, s: (b, s, 0)),    # z_out
        pl.BlockSpec((1, 1, 1), lambda b, s: (b, 0, 0)),            # ldj_out
    ]
    out_shape = (jax.ShapeDtypeStruct((B, S, c_in), z.dtype),
                 jax.ShapeDtypeStruct((B, 1, 1), jnp.float32))

    # VMEM budget: resident params + double-buffered seq tiles (+ slack),
    # clamped to <= 64 MiB so it is valid on v7x as well.
    tile_bytes = tile_s * row_bytes + tile_s * two_c * 4
    needed = weight.nbytes + b2d.nbytes + 2 * tile_bytes + (4 << 20)
    vmem_limit = int(min(max(needed, 32 << 20), 64 << 20))

    flops = 2 * B * S * c_ext * two_c + 8 * B * S * c_in
    bytes_accessed = (2 * z.nbytes + ext_input.nbytes + weight.nbytes
                      + bias.nbytes + 2 * ldj3.nbytes
                      + (mask3.nbytes if use_mask else 0))
    cost = pl.CostEstimate(flops=flops,
                           transcendentals=2 * B * S * c_in,
                           bytes_accessed=bytes_accessed)

    kernel = functools.partial(
        _ext_actnorm_kernel, c_in=c_in, seq_len=S, tile_s=tile_s,
        reverse=reverse, use_mask=use_mask)

    z_out, ldj_out = pl.pallas_call(
        kernel,
        out_shape=out_shape,
        grid_spec=pltpu.PrefetchScalarGridSpec(
            num_scalar_prefetch=0,
            grid=(B, num_s),
            in_specs=in_specs,
            out_specs=out_specs,
        ),
        compiler_params=pltpu.CompilerParams(
            dimension_semantics=("parallel", "arbitrary"),
            vmem_limit_bytes=vmem_limit),
        cost_estimate=cost,
    )(*inputs)

    return z_out, ldj_out.reshape(B).astype(ldj.dtype)


def init_pred_net_params(key, c_ext, c_in, zero_init=False, dtype=jnp.float32):
    """nn.Linear(c_ext, 2*c_in) default init; zero_init matches the
    ExtActNormFlow(zero_init=True) behaviour (zero last-layer weight/bias)."""
    # TODO(synk): data_init_forward (data-dependent bias init) not implemented.
    k_w, k_b = jax.random.split(key)
    bound = 1.0 / math.sqrt(c_ext)
    weight = jax.random.uniform(k_w, (2 * c_in, c_ext), dtype, -bound, bound)
    b = jax.random.uniform(k_b, (2 * c_in,), dtype, -bound, bound)
    if zero_init:
        weight = jnp.zeros_like(weight)
        b = jnp.zeros_like(b)
    return weight, b


if __name__ == "__main__":
    key = jax.random.PRNGKey(0)
    k_z, k_x, k_p = jax.random.split(key, 3)

    batch, seq, c_in, c_ext = 2, 16, 16, 8
    z = jax.random.normal(k_z, (batch, seq, c_in), jnp.float32)
    ext = jax.random.normal(k_x, (batch, seq, c_ext), jnp.float32)
    weight, bias = init_pred_net_params(k_p, c_ext, c_in)

    # Forward pass through the Pallas kernel.
    z_fwd, ldj_fwd = ext_actnorm_flow(z, weight, bias, ext_input=ext)
    z_fwd, ldj_fwd = jax.block_until_ready((z_fwd, ldj_fwd))

    # Pure-JAX reference (same math as the PyTorch forward).
    nn_out = jnp.einsum("bse,ce->bsc", ext, weight,
                        precision=jax.lax.Precision.HIGHEST) + bias
    t_exp, s_raw = jnp.split(nn_out, 2, axis=-1)
    s_exp = jnp.tanh(s_raw)
    z_exp = (z + t_exp) * jnp.exp(s_exp)
    ldj_exp = jnp.sum(s_exp, axis=(1, 2))

    assert z_fwd.shape == (batch, seq, c_in) and ldj_fwd.shape == (batch,)
    assert not bool(jnp.any(jnp.isnan(z_fwd))), "z contains NaN"
    assert not bool(jnp.any(jnp.isnan(ldj_fwd))), "ldj contains NaN"
    # Tolerances allow for MXU pass-count differences vs. the XLA reference.
    assert jnp.allclose(z_fwd, z_exp, atol=1e-2, rtol=1e-2), "z mismatch"
    assert jnp.allclose(ldj_fwd, ldj_exp, atol=5e-2, rtol=1e-2), "ldj mismatch"

    # Reverse pass must invert the forward pass.
    z_back, ldj_back = ext_actnorm_flow(z_fwd, weight, bias, ldj=ldj_fwd,
                                        ext_input=ext, reverse=True)
    z_back, ldj_back = jax.block_until_ready((z_back, ldj_back))
    assert jnp.allclose(z_back, z, atol=1e-3, rtol=1e-3), "reverse z mismatch"
    assert jnp.allclose(ldj_back, jnp.zeros_like(ldj_back), atol=1e-3), \
        "reverse ldj mismatch"

    print("KERNEL_OK")
</pallas_src>

<mosaic_0001>
module attributes {stable_mosaic.version = 11 : i64} {
  func.func @_ext_actnorm_kernel(%arg0: i32, %arg1: i32, %arg2: memref<1x16x16xf32, #tpu.memory_space<vmem>>, %arg3: memref<1x16x8xf32, #tpu.memory_space<vmem>>, %arg4: memref<32x8xf32, #tpu.memory_space<vmem>>, %arg5: memref<1x32xf32, #tpu.memory_space<vmem>>, %arg6: memref<1x1x1xf32, #tpu.memory_space<vmem>>, %arg7: memref<1x16x16xf32, #tpu.memory_space<vmem>>, %arg8: memref<1x1x1xf32, #tpu.memory_space<vmem>>) attributes {dimension_semantics = [#tpu.dimension_semantics<parallel>, #tpu.dimension_semantics<arbitrary>], iteration_bounds = array<i64: 2, 1>, scalar_prefetch = 0 : i64, scratch_operands = 0 : i64, tpu.core_type = #tpu.core_type<tc>, window_params = [{transform_indices = @transform_0, window_bounds = array<i64: 1, 16, 16>}, {transform_indices = @transform_1, window_bounds = array<i64: 1, 16, 8>}, {pipeline_mode = #tpu.pipeline_mode<synchronous>, transform_indices = @transform_2, window_bounds = array<i64: 32, 8>}, {pipeline_mode = #tpu.pipeline_mode<synchronous>, transform_indices = @transform_3, window_bounds = array<i64: 1, 32>}, {transform_indices = @transform_4, window_bounds = array<i64: 1, 1, 1>}, {transform_indices = @transform_5, window_bounds = array<i64: 1, 16, 16>}, {transform_indices = @transform_6, window_bounds = array<i64: 1, 1, 1>}]} {
    %c0_i32 = arith.constant 0 : i32
    %0 = arith.cmpi eq, %arg1, %c0_i32 : i32
    %1 = arith.extui %0 : i1 to i32
    %c0_i32_0 = arith.constant 0 : i32
    %2 = arith.cmpi ne, %1, %c0_i32_0 : i32
    scf.if %2 {
      %c0_21 = arith.constant 0 : index
      %c0_22 = arith.constant 0 : index
      %c0_23 = arith.constant 0 : index
      %39 = vector.load %arg6[%c0_21, %c0_22, %c0_23] : memref<1x1x1xf32, #tpu.memory_space<vmem>>, vector<1x1x1xf32>
      %c0_24 = arith.constant 0 : index
      %c0_25 = arith.constant 0 : index
      %c0_26 = arith.constant 0 : index
      %40 = vector.load %arg8[%c0_24, %c0_25, %c0_26] : memref<1x1x1xf32, #tpu.memory_space<vmem>>, vector<1x1x1xf32>
      tpu.vector_store %arg8[%c0_24, %c0_25, %c0_26], %39 {strides = array<i32>} : memref<1x1x1xf32, #tpu.memory_space<vmem>>, vector<1x1x1xf32>,
    } else {
    }
    %c0 = arith.constant 0 : index
    %c0_1 = arith.constant 0 : index
    %c0_2 = arith.constant 0 : index
    %3 = vector.load %arg3[%c0, %c0_1, %c0_2] : memref<1x16x8xf32, #tpu.memory_space<vmem>>, vector<1x16x8xf32>
    %4 = vector.shape_cast %3 : vector<1x16x8xf32> to vector<16x8xf32>
    %c0_3 = arith.constant 0 : index
    %c0_4 = arith.constant 0 : index
    %5 = vector.load %arg4[%c0_3, %c0_4] : memref<32x8xf32, #tpu.memory_space<vmem>>, vector<32x8xf32>
    %cst = arith.constant dense<0.000000e+00> : vector<16x32xf32>
    %6 = tpu.matmul %4, %5, %cst {dimension_numbers = #tpu.dot_dimension_numbers<[1], [1], [0], [0], [0, 0, 1, 0], [], []>} : vector<16x8xf32>, vector<32x8xf32>, vector<16x32xf32> -> vector<16x32xf32>
    %c0_5 = arith.constant 0 : index
    %c0_6 = arith.constant 0 : index
    %7 = vector.load %arg5[%c0_5, %c0_6] : memref<1x32xf32, #tpu.memory_space<vmem>>, vector<1x32xf32>
    %8 = vector.broadcast %7 : vector<1x32xf32> to vector<16x32xf32>
    %9 = arith.addf %6, %8 : vector<16x32xf32>
    %10 = vector.extract_strided_slice %9 {offsets = [0, 0], sizes = [16, 16], strides = [1, 1]} : vector<16x32xf32> to vector<16x16xf32>
    %11 = vector.extract_strided_slice %9 {offsets = [0, 16], sizes = [16, 16], strides = [1, 1]} : vector<16x32xf32> to vector<16x16xf32>
    %12 = math.tanh %11 : vector<16x16xf32>
    %c0_7 = arith.constant 0 : index
    %c0_8 = arith.constant 0 : index
    %c0_9 = arith.constant 0 : index
    %13 = vector.load %arg2[%c0_7, %c0_8, %c0_9] : memref<1x16x16xf32, #tpu.memory_space<vmem>>, vector<1x16x16xf32>
    %14 = vector.shape_cast %13 : vector<1x16x16xf32> to vector<16x16xf32>
    %15 = arith.addf %14, %10 : vector<16x16xf32>
    %16 = math.exp %12 : vector<16x16xf32>
    %17 = arith.mulf %15, %16 : vector<16x16xf32>
    %c0_10 = arith.constant 0 : index
    %c0_11 = arith.constant 0 : index
    %c0_12 = arith.constant 0 : index
    %18 = vector.load %arg7[%c0_10, %c0_11, %c0_12] : memref<1x16x16xf32, #tpu.memory_space<vmem>>, vector<1x16x16xf32>
    %19 = vector.shape_cast %18 : vector<1x16x16xf32> to vector<16x16xf32>
    %20 = vector.shape_cast %17 : vector<16x16xf32> to vector<1x16x16xf32>
    tpu.vector_store %arg7[%c0_10, %c0_11, %c0_12], %20 {strides = array<i32>} : memref<1x16x16xf32, #tpu.memory_space<vmem>>, vector<1x16x16xf32>,
    %21 = tpu.iota {dimensions = array<i32: 0>} : vector<16x1xi32>
    %c16_i32 = arith.constant 16 : i32
    %22 = arith.muli %arg1, %c16_i32 : i32
    %23 = vector.broadcast %22 : i32 to vector<16x1xi32>
    %24 = arith.addi %21, %23 : vector<16x1xi32>
    %c16_i32_13 = arith.constant 16 : i32
    %25 = vector.broadcast %c16_i32_13 : i32 to vector<16x1xi32>
    %26 = arith.cmpi slt, %24, %25 : vector<16x1xi32>
    %27 = arith.extui %26 : vector<16x1xi1> to vector<16x1xi32>
    %28 = arith.sitofp %27 : vector<16x1xi32> to vector<16x1xf32>
    %29 = vector.broadcast %28 : vector<16x1xf32> to vector<16x16xf32>
    %30 = arith.mulf %12, %29 : vector<16x16xf32>
    %31 = vector.shape_cast %30 : vector<16x16xf32> to vector<1x16x16xf32>
    %cst_14 = arith.constant dense<0.000000e+00> : vector<1xf32>
    %32 = vector.multi_reduction <add>, %31, %cst_14 [1, 2] : vector<1x16x16xf32> to vector<1xf32>
    %33 = vector.shape_cast %32 : vector<1xf32> to vector<1x1x1xf32>
    %34 = vector.extract %33[0, 0, 0] : f32 from vector<1x1x1xf32>
    %c0_15 = arith.constant 0 : index
    %c0_16 = arith.constant 0 : index
    %c0_17 = arith.constant 0 : index
    %35 = vector.load %arg8[%c0_15, %c0_16, %c0_17] : memref<1x1x1xf32, #tpu.memory_space<vmem>>, vector<1x1x1xf32>
    %36 = vector.broadcast %34 : f32 to vector<1x1x1xf32>
    %37 = arith.addf %35, %36 : vector<1x1x1xf32>
    %c0_18 = arith.constant 0 : index
    %c0_19 = arith.constant 0 : index
    %c0_20 = arith.constant 0 : index
    %38 = vector.load %arg8[%c0_18, %c0_19, %c0_20] : memref<1x1x1xf32, #tpu.memory_space<vmem>>, vector<1x1x1xf32>
    tpu.vector_store %arg8[%c0_18, %c0_19, %c0_20], %37 {strides = array<i32>} : memref<1x1x1xf32, #tpu.memory_space<vmem>>, vector<1x1x1xf32>,
    return
  }
  func.func @transform_0(%arg0: i32, %arg1: i32) -> (i32, i32, i32) {
    %c0_i32 = arith.constant 0 : i32
    %c0_i32_0 = arith.constant 0 : i32
    return %arg0, %arg1, %c0_i32 : i32, i32, i32
  }
  func.func @transform_1(%arg0: i32, %arg1: i32) -> (i32, i32, i32) {
    %c0_i32 = arith.constant 0 : i32
    %c0_i32_0 = arith.constant 0 : i32
    return %arg0, %arg1, %c0_i32 : i32, i32, i32
  }
  func.func @transform_2(%arg0: i32, %arg1: i32) -> (i32, i32) {
    %c0_i32 = arith.constant 0 : i32
    %c0_i32_0 = arith.constant 0 : i32
    %c0_i32_1 = arith.constant 0 : i32
    return %c0_i32, %c0_i32_0 : i32, i32
  }
  func.func @transform_3(%arg0: i32, %arg1: i32) -> (i32, i32) {
    %c0_i32 = arith.constant 0 : i32
    %c0_i32_0 = arith.constant 0 : i32
    %c0_i32_1 = arith.constant 0 : i32
    return %c0_i32, %c0_i32_0 : i32, i32
  }
  func.func @transform_4(%arg0: i32, %arg1: i32) -> (i32, i32, i32) {
    %c0_i32 = arith.constant 0 : i32
    %c0_i32_0 = arith.constant 0 : i32
    %c0_i32_1 = arith.constant 0 : i32
    return %arg0, %c0_i32, %c0_i32_0 : i32, i32, i32
  }
  func.func @transform_5(%arg0: i32, %arg1: i32) -> (i32, i32, i32) {
    %c0_i32 = arith.constant 0 : i32
    %c0_i32_0 = arith.constant 0 : i32
    return %arg0, %arg1, %c0_i32 : i32, i32, i32
  }
  func.func @transform_6(%arg0: i32, %arg1: i32) -> (i32, i32, i32) {
    %c0_i32 = arith.constant 0 : i32
    %c0_i32_0 = arith.constant 0 : i32
    %c0_i32_1 = arith.constant 0 : i32
    return %arg0, %c0_i32, %c0_i32_0 : i32, i32, i32
  }
}

</mosaic_0001>

<llo_original>
// kernel: tpu_custom_call.1
$region0: #{tpu_custom_call.1}
  #allocation0 [shape = 'u32[]', space=smem, size = 0x4, offset = 0x4, fixed_abs, tag = 'smem constant byte address 0x4 - core index']
  #allocation1 [shape = 'u32[144,128]{1,0:T(1,128)}', space=vmem, size = 0x12000, scoped, tag = 'internal scratch']
  %s0 = inlined_call_operand.vmem [shape: f32[2,16,16], index: 0, kind: input, shape index: {}]
  %s1 = inlined_call_operand.vmem [shape: f32[2,16,8], index: 1, kind: input, shape index: {}]
  %s2 = inlined_call_operand.vmem [shape: f32[32,8], index: 2, kind: input, shape index: {}]
  %s3 = inlined_call_operand.vmem [shape: f32[1,32], index: 3, kind: input, shape index: {}]
  %s4 = inlined_call_operand.vmem [shape: f32[2,1,1], index: 4, kind: input, shape index: {}]
  %s5 = inlined_call_operand.hbm [shape: f32[2,16,16], index: 5, kind: output, shape index: {0}]
  %s6 = inlined_call_operand.vmem [shape: f32[2,1,1], index: 6, kind: output, shape index: {1}]
  %7 = xla_tuple %s5, %s6
  %s8 = sld [smem:[#allocation0]]
  $region65: #{tpu_custom_call.1} parent=0
    _
  %s10 = ssub.s32 1, %s8
  %s11 = scalar_select 0, %s10, %s8
  $region1: #{tpu_custom_call.1} parent=0
    #allocation2 [shape = 'u8[16384]{0}', space=vmem, size = 0x4000, scoped, tag = 'output window, operand 0']
    #allocation3 [shape = 's32[2]{0}', space=sflag, size = 0x8, scoped, tag = 'scoped memory for tpu_custom_call.1']
    %12 = vsyncpa [#allocation3], 0
    %s13 = scalar_lea.sflag [#allocation3], 1
    %14 = vsyncpa %s13, 0
    loop: start=0, step=1, limit=4
    $region2: #{tpu_custom_call.1} parent=1 // loop_pre_header
      _
    $region3: #{tpu_custom_call.1} parent=1 // loop_header
      %s16 = sphi 0, %s20
      %p17 = scmp.ge.s32.totalorder %s16, 4
      %s23 = sphi 0, %s35
      %s24 = sphi 0, %s31
      %s25 = sphi 0, %s23
      %s26 = sphi 0, %s24
      %s27 = sphi 0, %s25
      %s28 = sphi 0, %s26
      %s40 = sphi 0, %s42
      %s43 = sphi 0, %s40
      %s44 = sphi 0, %s43
      %s60 = sphi 0, %s44
      %s68 = sphi 0, %s70
      %s71 = sphi 0, %s68
      %s72 = sphi 0, %s71
      %s88 = sphi 0, %s72
      %s92 = sphi 0, %s92
      %s94 = sphi 0, %s92
      %s95 = sphi 0, %s94
      %s109 = sphi 0, %s95
      %s113 = sphi 0, %s113
      %s115 = sphi 0, %s113
      %s116 = sphi 0, %s115
      %s130 = sphi 0, %s116
      %s136 = sphi 0, %s138
      %s139 = sphi 0, %s136
      %s140 = sphi 0, %s139
      %s156 = sphi 0, %s140
      %s164 = sphi 0, %s166
      %s167 = sphi 0, %s164
      %s168 = sphi 0, %s167
      %s184 = sphi 0, %s168
      %s190 = sphi 0, %s192
      %s193 = sphi 0, %s190
      %s194 = sphi 0, %s193
      %s210 = sphi 0, %s194
    $region4: #{tpu_custom_call.1} parent=1 // loop_header_branch
      %19 = sbr.rel (%p17) target = $region8
    $region5: #{tpu_custom_call.1} parent=1 // loop_body
      %s21 = ssub.s32 %s16, 1
      %s22 = ssub.s32 %s16, 2
      %s29 = sadd.s32 1, %s24
      %p30 = scmp.ge.s32.totalorder %s29, 1
      %s31 = scalar_select %p30, 0, %s29
      %s32 = sadd.s32 1, %s23
      %s33 = scalar_select %p30, %s32, %s23
      %p34 = scmp.ge.s32.totalorder %s33, 2
      %s35 = scalar_select %p34, 0, %s33
      %s36 = ssub.s32 %s23, %s35
      %s37 = ssub.s32 %s24, %s31
      %s38 = sor.u32 %s36, %s37
      %p39 = scmp.eq.s32.totalorder %s38, 0
      %s41 = sadd.s32 %s40, 1
      %s42 = scalar_select %p39, %s40, %s41
      %p45 = pneg %p39
      %p46 = scmp.eq.s32.totalorder %s16, 1
      %p47 = por %p45, %p46
      %p48 = scmp.ne.s32.totalorder %s40, %s43
      %p49 = scmp.eq.s32.totalorder %s16, 0
      %p50 = por %p48, %p49
      %p51 = scmp.ne.s32.totalorder %s40, %s43
      %p52 = scmp.eq.s32.totalorder %s21, 1
      %p53 = por %p51, %p52
      %p54 = scmp.ne.s32.totalorder %s43, %s44
      %p55 = scmp.eq.s32.totalorder %s21, 0
      %p56 = por %p54, %p55
      %p57 = scmp.ne.s32.totalorder %s43, %s44
      %p58 = scmp.eq.s32.totalorder %s22, 1
      %p59 = por %p57, %p58
      %p61 = scmp.ne.s32.totalorder %s44, %s60
      %p62 = scmp.eq.s32.totalorder %s22, 0
      %p63 = por %p61, %p62
      %s64 = ssub.s32 %s23, %s35
      %s65 = ssub.s32 %s24, %s31
      %s66 = sor.u32 %s64, %s65
      %p67 = scmp.eq.s32.totalorder %s66, 0
      %s69 = sadd.s32 %s68, 1
      %s70 = scalar_select %p67, %s68, %s69
      %p73 = pneg %p67
      %p74 = scmp.eq.s32.totalorder %s16, 1
      %p75 = por %p73, %p74
      %p76 = scmp.ne.s32.totalorder %s68, %s71
      %p77 = scmp.eq.s32.totalorder %s16, 0
      %p78 = por %p76, %p77
      %p79 = scmp.ne.s32.totalorder %s68, %s71
      %p80 = scmp.eq.s32.totalorder %s21, 1
      %p81 = por %p79, %p80
      %p82 = scmp.ne.s32.totalorder %s71, %s72
      %p83 = scmp.eq.s32.totalorder %s21, 0
      %p84 = por %p82, %p83
      %p85 = scmp.ne.s32.totalorder %s71, %s72
      %p86 = scmp.eq.s32.totalorder %s22, 1
      %p87 = por %p85, %p86
      %p89 = scmp.ne.s32.totalorder %s72, %s88
      %p90 = scmp.eq.s32.totalorder %s22, 0
      %p91 = por %p89, %p90
      %s93 = sadd.s32 %s92, 1
      %p96 = scmp.eq.s32.totalorder %s16, 1
      %p97 = scmp.ne.s32.totalorder %s92, %s94
      %p98 = scmp.eq.s32.totalorder %s16, 0
      %p99 = por %p97, %p98
      %p100 = scmp.ne.s32.totalorder %s92, %s94
      %p101 = scmp.eq.s32.totalorder %s21, 1
      %p102 = por %p100, %p101
      %p103 = scmp.ne.s32.totalorder %s94, %s95
      %p104 = scmp.eq.s32.totalorder %s21, 0
      %p105 = por %p103, %p104
      %p106 = scmp.ne.s32.totalorder %s94, %s95
      %p107 = scmp.eq.s32.totalorder %s22, 1
      %p108 = por %p106, %p107
      %p110 = scmp.ne.s32.totalorder %s95, %s109
      %p111 = scmp.eq.s32.totalorder %s22, 0
      %p112 = por %p110, %p111
      %s114 = sadd.s32 %s113, 1
      %p117 = scmp.eq.s32.totalorder %s16, 1
      %p118 = scmp.ne.s32.totalorder %s113, %s115
      %p119 = scmp.eq.s32.totalorder %s16, 0
      %p120 = por %p118, %p119
      %p121 = scmp.ne.s32.totalorder %s113, %s115
      %p122 = scmp.eq.s32.totalorder %s21, 1
      %p123 = por %p121, %p122
      %p124 = scmp.ne.s32.totalorder %s115, %s116
      %p125 = scmp.eq.s32.totalorder %s21, 0
      %p126 = por %p124, %p125
      %p127 = scmp.ne.s32.totalorder %s115, %s116
      %p128 = scmp.eq.s32.totalorder %s22, 1
      %p129 = por %p127, %p128
      %p131 = scmp.ne.s32.totalorder %s116, %s130
      %p132 = scmp.eq.s32.totalorder %s22, 0
      %p133 = por %p131, %p132
      %s134 = ssub.s32 %s23, %s35
      %p135 = scmp.eq.s32.totalorder %s134, 0
      %s137 = sadd.s32 %s136, 1
      %s138 = scalar_select %p135, %s136, %s137
      %p141 = pneg %p135
      %p142 = scmp.eq.s32.totalorder %s16, 1
      %p143 = por %p141, %p142
      %p144 = scmp.ne.s32.totalorder %s136, %s139
      %p145 = scmp.eq.s32.totalorder %s16, 0
      %p146 = por %p144, %p145
      %p147 = scmp.ne.s32.totalorder %s136, %s139
      %p148 = scmp.eq.s32.totalorder %s21, 1
      %p149 = por %p147, %p148
      %p150 = scmp.ne.s32.totalorder %s139, %s140
      %p151 = scmp.eq.s32.totalorder %s21, 0
      %p152 = por %p150, %p151
      %p153 = scmp.ne.s32.totalorder %s139, %s140
      %p154 = scmp.eq.s32.totalorder %s22, 1
      %p155 = por %p153, %p154
      %p157 = scmp.ne.s32.totalorder %s140, %s156
      %p158 = scmp.eq.s32.totalorder %s22, 0
      %p159 = por %p157, %p158
      %s160 = ssub.s32 %s23, %s35
      %s161 = ssub.s32 %s24, %s31
      %s162 = sor.u32 %s160, %s161
      %p163 = scmp.eq.s32.totalorder %s162, 0
      %s165 = sadd.s32 %s164, 1
      %s166 = scalar_select %p163, %s164, %s165
      %p169 = pneg %p163
      %p170 = scmp.eq.s32.totalorder %s16, 1
      %p171 = por %p169, %p170
      %p172 = scmp.ne.s32.totalorder %s164, %s167
      %p173 = scmp.eq.s32.totalorder %s16, 0
      %p174 = por %p172, %p173
      %p175 = scmp.ne.s32.totalorder %s164, %s167
      %p176 = scmp.eq.s32.totalorder %s21, 1
      %p177 = por %p175, %p176
      %p178 = scmp.ne.s32.totalorder %s167, %s168
      %p179 = scmp.eq.s32.totalorder %s21, 0
      %p180 = por %p178, %p179
      %p181 = scmp.ne.s32.totalorder %s167, %s168
      %p182 = scmp.eq.s32.totalorder %s22, 1
      %p183 = por %p181, %p182
      %p185 = scmp.ne.s32.totalorder %s168, %s184
      %p186 = scmp.eq.s32.totalorder %s22, 0
      %p187 = por %p185, %p186
      %s188 = ssub.s32 %s23, %s35
      %p189 = scmp.eq.s32.totalorder %s188, 0
      %s191 = sadd.s32 %s190, 1
      %s192 = scalar_select %p189, %s190, %s191
      %p195 = pneg %p189
      %p196 = scmp.eq.s32.totalorder %s16, 1
      %p197 = por %p195, %p196
      %p198 = scmp.ne.s32.totalorder %s190, %s193
      %p199 = scmp.eq.s32.totalorder %s16, 0
      %p200 = por %p198, %p199
      %p201 = scmp.ne.s32.totalorder %s190, %s193
      %p202 = scmp.eq.s32.totalorder %s21, 1
      %p203 = por %p201, %p202
      %p204 = scmp.ne.s32.totalorder %s193, %s194
      %p205 = scmp.eq.s32.totalorder %s21, 0
      %p206 = por %p204, %p205
      %p207 = scmp.ne.s32.totalorder %s193, %s194
      %p208 = scmp.eq.s32.totalorder %s22, 1
      %p209 = por %p207, %p208
      %p211 = scmp.ne.s32.totalorder %s194, %s210
      %p212 = scmp.eq.s32.totalorder %s22, 0
      %p213 = por %p211, %p212
      %p214 = scmp.le.s32.totalorder 1, %s16
      %p215 = scmp.lt.s32.totalorder %s16, 3
      %p216 = pnand %p214, %p215
      %p217 = pneg %p216
      // Predicated region
      $region9: #{tpu_custom_call.1} parent=5 // pred_check
        _
      $region10: #{tpu_custom_call.1} parent=5 // pred_check_branch
        %219 = sbr.rel (%p216) target = $region12
      $region11: #{tpu_custom_call.1} parent=5 // pred_region
        %s220 = ssub.s32 %s16, 1
        // Predicated region
        $region13: #{tpu_custom_call.1} parent=11 // pred_check
          %p221 = pneg %p105
        $region14: #{tpu_custom_call.1} parent=11 // pred_check_branch
          %223 = sbr.rel (%p221) target = $region16
        $region15: #{tpu_custom_call.1} parent=11 // pred_region
          _
        $region16: #{tpu_custom_call.1} parent=11 // pred_fallthru
          _
        // Predicated region
        $region17: #{tpu_custom_call.1} parent=11 // pred_check
          %p224 = pneg %p126
        $region18: #{tpu_custom_call.1} parent=11 // pred_check_branch
          %226 = sbr.rel (%p224) target = $region20
        $region19: #{tpu_custom_call.1} parent=11 // pred_region
          _
        $region20: #{tpu_custom_call.1} parent=11 // pred_fallthru
          _
      $region12: #{tpu_custom_call.1} parent=5 // pred_fallthru
        _
      %p227 = scmp.lt.s32.totalorder %s16, 2
      // Predicated region
      $region21: #{tpu_custom_call.1} parent=5 // pred_check
        %p228 = pneg %p227
      $region22: #{tpu_custom_call.1} parent=5 // pred_check_branch
        %230 = sbr.rel (%p228) target = $region24
      $region23: #{tpu_custom_call.1} parent=5 // pred_region
        // Predicated region
        $region25: #{tpu_custom_call.1} parent=23 // pred_check
          %p231 = pneg %p50
        $region26: #{tpu_custom_call.1} parent=23 // pred_check_branch
          %233 = sbr.rel (%p231) target = $region28
        $region27: #{tpu_custom_call.1} parent=23 // pred_region
          %s234 = smul.u32 2, %s24
          %p235 = scmp.lt.s32.totalorder %s23, 1
          %s236 = scalar_select %p235, %s23, 1
          %p237 = scmp.lt.s32.totalorder %s234, 1
          %s238 = scalar_select %p237, %s234, 1
          %s239 = smul.addr %s236, 2
          %s240 = sadd.s32 %s238, %s239
          %s241 = smul.addr %s240, 8
          %s242 = scalar_lea.vmem %s0, %s241
          %s243 = smul.u32 2, %s24
        $region28: #{tpu_custom_call.1} parent=23 // pred_fallthru
          _
        // Predicated region
        $region29: #{tpu_custom_call.1} parent=23 // pred_check
          %p244 = pneg %p78
        $region30: #{tpu_custom_call.1} parent=23 // pred_check_branch
          %246 = sbr.rel (%p244) target = $region32
        $region31: #{tpu_custom_call.1} parent=23 // pred_region
          %s247 = smul.u32 2, %s24
          %p248 = scmp.lt.s32.totalorder %s23, 1
          %s249 = scalar_select %p248, %s23, 1
          %p250 = scmp.lt.s32.totalorder %s247, 1
          %s251 = scalar_select %p250, %s247, 1
          %s252 = smul.addr %s249, 2
          %s253 = sadd.s32 %s251, %s252
          %s254 = smul.addr %s253, 8
          %s255 = scalar_lea.vmem %s1, %s254
          %s256 = smul.u32 2, %s24
        $region32: #{tpu_custom_call.1} parent=23 // pred_fallthru
          _
        // Predicated region
        $region33: #{tpu_custom_call.1} parent=23 // pred_check
          %p257 = pneg %p146
        $region34: #{tpu_custom_call.1} parent=23 // pred_check_branch
          %259 = sbr.rel (%p257) target = $region36
        $region35: #{tpu_custom_call.1} parent=23 // pred_region
          %p260 = scmp.lt.s32.totalorder %s23, 1
          %s261 = scalar_select %p260, %s23, 1
          %s262 = scalar_lea.vmem %s4, %s261
        $region36: #{tpu_custom_call.1} parent=23 // pred_fallthru
          _
      $region24: #{tpu_custom_call.1} parent=5 // pred_fallthru
        _
      %p263 = scmp.le.s32.totalorder 1, %s16
      %p264 = scmp.lt.s32.totalorder %s16, 3
      %p265 = pnand %p263, %p264
      %p266 = pneg %p265
      // Predicated region
      $region37: #{tpu_custom_call.1} parent=5 // pred_check
        _
      $region38: #{tpu_custom_call.1} parent=5 // pred_check_branch
        %268 = sbr.rel (%p265) target = $region40
      $region39: #{tpu_custom_call.1} parent=5 // pred_region
        %s269 = ssub.s32 %s16, 1
        %s270 = smul.u32 2, %s26
        %p271 = scmp.lt.s32.totalorder %s25, 1
        %s272 = scalar_select %p271, %s25, 1
        %p273 = scmp.lt.s32.totalorder %s270, 1
        %s274 = scalar_select %p273, %s270, 1
        %s275 = smul.addr %s272, 2
        %s276 = sadd.s32 %s274, %s275
        %s277 = smul.addr %s276, 8
        %s278 = scalar_lea.vmem %s0, %s277
        %p279 = pneg %p56
        %p280 = pneg %p53
        %s281 = smul.u32 2, %s26
        %p282 = scmp.lt.s32.totalorder %s25, 1
        %s283 = scalar_select %p282, %s25, 1
        %p284 = scmp.lt.s32.totalorder %s281, 1
        %s285 = scalar_select %p284, %s281, 1
        %s286 = smul.addr %s283, 2
        %s287 = sadd.s32 %s285, %s286
        %s288 = smul.addr %s287, 8
        %s289 = scalar_lea.vmem %s1, %s288
        %p290 = pneg %p84
        %p291 = pneg %p81
        %p292 = pneg %p105
        %p293 = pneg %p102
        %p294 = pneg %p126
        %p295 = pneg %p123
        %p296 = scmp.lt.s32.totalorder %s25, 1
        %s297 = scalar_select %p296, %s25, 1
        %s298 = scalar_lea.vmem %s4, %s297
        %p299 = pneg %p152
        %p300 = pneg %p149
        %p301 = pneg %p180
        %p302 = pneg %p177
        %s303 = sand.u32 %s167, 1
        %s304 = scalar_lea.sflag [#allocation3], %s303
        %s305 = sand.u32 %s167, 1
        %s306 = smul.addr %s305, 16
        %s307 = scalar_lea.vmem [#allocation2], %s306
        %p308 = pneg %p206
        %p309 = pneg %p203
        %p310 = scmp.lt.s32.totalorder %s25, 1
        %s311 = scalar_select %p310, %s25, 1
        %s312 = scalar_lea.vmem %s6, %s311
        %s313 = smul.u32 2, %s26
        %p314 = scmp.lt.s32.totalorder %s25, 1
        %s315 = scalar_select %p314, %s25, 1
        %p316 = scmp.lt.s32.totalorder %s313, 1
        %s317 = scalar_select %p316, %s313, 1
        %s318 = smul.addr %s315, 2
        %s319 = sadd.s32 %s317, %s318
        %s320 = smul.addr %s319, 8
        %s321 = scalar_lea.vmem %s0, %s320
        %s322 = smul.u32 2, %s26
        %s323 = smul.u32 2, %s26
        %p324 = scmp.lt.s32.totalorder %s25, 1
        %s325 = scalar_select %p324, %s25, 1
        %p326 = scmp.lt.s32.totalorder %s323, 1
        %s327 = scalar_select %p326, %s323, 1
        %s328 = smul.addr %s325, 2
        %s329 = sadd.s32 %s327, %s328
        %s330 = smul.addr %s329, 8
        %s331 = scalar_lea.vmem %s1, %s330
        %s332 = smul.u32 2, %s26
        %p333 = scmp.lt.s32.totalorder %s25, 1
        %s334 = scalar_select %p333, %s25, 1
        %s335 = scalar_lea.vmem %s4, %s334
        %s336 = smul.u32 2, %s26
        %p337 = scmp.lt.s32.totalorder %s25, 1
        %s338 = scalar_select %p337, %s25, 1
        %s339 = scalar_lea.vmem %s6, %s338
        %p340 = scmp.eq.s32.totalorder %s26, 0
        // Predicated region
        $region41: #{tpu_custom_call.1} parent=39 // pred_check
          %p341 = pneg %p340
        $region42: #{tpu_custom_call.1} parent=39 // pred_check_branch
          %343 = sbr.rel (%p341) target = $region44
        $region43: #{tpu_custom_call.1} parent=39 // pred_region
          %v344 = vld [vmem:[%s335] sm:$0x1]
          %vm345 = vcmask 0
          %346 = vst.msk [vmem:[%s339] sm:$0x1] %vm345, %v344
        $region44: #{tpu_custom_call.1} parent=39 // pred_fallthru
          _
        %v347 = vld [vmem:[%s331] sm:$0xff]
        %v348 = vld [vmem:[%s331 + $0x8] sm:$0xff]
        %v349 = vld [vmem:[%s2] sm:$0xff]
        %v350 = vld [vmem:[%s2 + $0x8] sm:$0xff]
        %v351 = vld [vmem:[%s2 + $0x10] sm:$0xff]
        %v352 = vld [vmem:[%s2 + $0x18] sm:$0xff]
        %v353 = vld [vmem:[%s3] sm:$0x1]
        %v355 = vlaneseq
        %v356 = vshrl.u32 %v355, 7
        %v357 = vsub.s32 0, %v356
        %v358 = vrot.slane %v353, %v357
        %vm360 = vcmask 64512
        %v362 = vsel %vm360, %v347, 0
        %v365 = vsel %vm360, %v348, 0
        %v368 = vsel %vm360, %v349, 0
        %v371 = vsel %vm360, %v350, 0
        %v374 = vsel %vm360, %v351, 0
        %v377 = vsel %vm360, %v352, 0
        %379 = vmatprep.subr.mxu0 0.0
        %380 = vmatpush1.xpose.msra.mxu0 %v368
        %381 = vmatprep.subr.mxu0 0.0
        %382 = vmatpush1.xpose.msra.mxu0 %v371
        %383 = vmatprep.subr.mxu0 0.0
        %384 = vmatpush1.xpose.msra.mxu0 %v374
        %385 = vmatprep.subr.mxu0 0.0
        %386 = vmatpush1.xpose.msra.mxu0 %v377
        %387 = vmatprep.subr.mxu0 0.0
        %388 = vmatpush1.xpose.msra.mxu0 0.0
        %389 = vmatprep.subr.mxu0 0.0
        %390 = vmatpush1.xpose.msra.mxu0 0.0
        %391 = vmatprep.subr.mxu0 0.0
        %392 = vmatpush1.xpose.msra.mxu0 0.0
        %393 = vmatprep.subr.mxu0 0.0
        %394 = vmatpush1.xpose.msra.mxu0 0.0
        %395 = vmatprep.subr.mxu0 0.0
        %396 = vmatpush1.xpose.msra.mxu0 0.0
        %397 = vmatprep.subr.mxu0 0.0
        %398 = vmatpush1.xpose.msra.mxu0 0.0
        %399 = vmatprep.subr.mxu0 0.0
        %400 = vmatpush1.xpose.msra.mxu0 0.0
        %401 = vmatprep.subr.mxu0 0.0
        %402 = vmatpush1.xpose.msra.mxu0 0.0
        %403 = vmatprep.subr.mxu0 0.0
        %404 = vmatpush1.xpose.msra.mxu0 0.0
        %405 = vmatprep.subr.mxu0 0.0
        %406 = vmatpush1.xpose.msra.mxu0 0.0
        %407 = vmatprep.subr.mxu0 0.0
        %408 = vmatpush1.xpose.msra.mxu0 0.0
        %409 = vmatprep.subr.mxu0 0.0
        %410 = vmatpush1.xpose.msra.mxu0 0.0
        %411 = vmatprep.subr.mxu0 0.0
        %412 = vmatpush1.xpose.msra.mxu0 0.0
        %413 = vmatprep.subr.mxu0 0.0
        %414 = vmatpush1.xpose.msra.mxu0 0.0
        %415 = vmatprep.subr.mxu0 0.0
        %416 = vmatpush1.xpose.msra.mxu0 0.0
        %417 = vmatprep.subr.mxu0 0.0
        %418 = vmatpush1.xpose.msra.mxu0 0.0
        %419 = vmatprep.subr.mxu0 0.0
        %420 = vmatpush1.xpose.msra.mxu0 0.0
        %421 = vmatprep.subr.mxu0 0.0
        %422 = vmatpush1.xpose.msra.mxu0 0.0
        %423 = vmatprep.subr.mxu0 0.0
        %424 = vmatpush1.xpose.msra.mxu0 0.0
        %425 = vmatprep.subr.mxu0 0.0
        %426 = vmatpush1.xpose.msra.mxu0 0.0
        %427 = vmatprep.subr.mxu0 0.0
        %428 = vmatpush1.xpose.msra.mxu0 0.0
        %429 = vmatprep.subr.mxu0 0.0
        %430 = vmatpush1.xpose.msra.mxu0 0.0
        %431 = vmatprep.subr.mxu0 0.0
        %432 = vmatpush1.xpose.msra.mxu0 0.0
        %433 = vmatprep.subr.mxu0 0.0
        %434 = vmatpush1.xpose.msra.mxu0 0.0
        %435 = vmatprep.subr.mxu0 0.0
        %436 = vmatpush1.xpose.msra.mxu0 0.0
        %437 = vmatprep.subr.mxu0 0.0
        %438 = vmatpush1.xpose.msra.mxu0 0.0
        %439 = vmatprep.subr.mxu0 0.0
        %440 = vmatpush1.xpose.msra.mxu0 0.0
        %441 = vmatprep.subr.mxu0 0.0
        %442 = vmatpush1.xpose.msra.mxu0 0.0
        %443 = vmatprep.mubr.f32.mxu0 0.0
        %444 = vmatmul.mubr.f32.gmra.mrb[0].mxu0 %v362
        %v445 = vpop.f32.mrb[0].mxu0
        %v446 = vadd.f32 %v358, %v445
        %v447 = vpop.f32.mrb[0].mxu0
        %448 = vmatprep.mubr.f32.mxu0 0.0
        %449 = vmatmul.mubr.f32.gmra.mrb[0].mxu0 %v365
        %v450 = vpop.f32.mrb[0].mxu0
        %v451 = vadd.f32 %v358, %v450
        %v452 = vpop.f32.mrb[0].mxu0
        %453 = vdwg.mxu0
        %v454 = vtanh.pop %v446
        %v455 = vtanh.pop %v451
        %v456 = vld [vmem:[%s321] sm:$0xff]
        %v457 = vld [vmem:[%s321 + $0x8] sm:$0xff]
        %v458 = vadd.f32 %v456, %v446
        %v459 = vadd.f32 %v457, %v451
        %v460 = vmul.f32 %v454, 1.442695
        %v461 = vpow.pop %v460
        %v462 = vmul.f32 %v455, 1.442695
        %v463 = vpow.pop %v462
        %466 = vrot.lane.b32.xlu0 %v461, 112
        %v467 = vpop.permute.xlu0 %466
        %468 = vrot.lane.b32.xlu0 %v463, 112
        %v469 = vpop.permute.xlu0 %468
        %v472 = vmul.f32 %v458, %v467
        %v473 = vmul.f32 %v459, %v469
        %vm474 = vcmask 130048
        %475 = vst.msk [vmem:[%s307] sm:$0xff] %vm474, %v472
        %476 = vst.msk [vmem:[%s307 + $0x8] sm:$0xff] %vm474, %v473
        %v477 = vlaneseq
        %v478 = vshrl.u32 %v477, 7
        %v479 = vadd.s32 %v478, 8
        %s480 = smul.u32 %s26, 16
        %v481 = vstv %s480
        %v482 = vadd.s32 %v478, %v481
        %v483 = vadd.s32 %v479, %v481
        %vm484 = vcmp.lt.s32.totalorder %v482, 16
        %vm485 = vcmp.lt.s32.totalorder %v483, 16
        %v486 = vsel %vm484, 1, 0
        %v487 = vsel %vm485, 1, 0
        %v488 = vcvt.s32.f32 %v486
        %v489 = vcvt.s32.f32 %v487
        %v490 = vmul.f32 %v454, %v488
        %v491 = vmul.f32 %v455, %v489
        %494 = vrot.lane.b32.xlu0 %v490, 112
        %v495 = vpop.permute.xlu0 %494
        %496 = vrot.lane.b32.xlu0 %v491, 112
        %v497 = vpop.permute.xlu0 %496
        %v500 = vsel %vm474, %v495, 0.0
        %v501 = vsel %vm474, %v497, 0.0
        %v502 = vadd.f32 %v500, %v501
        %503 = vadd.xlane.f32.xlu0 %v502
        %v504 = vpop.xlane.xlu0 %503
        %v505 = vrot.slane %v504, 4
        %v506 = vadd.f32 %v504, %v505
        %v507 = vrot.slane %v506, 2
        %v508 = vadd.f32 %v506, %v507
        %v509 = vrot.slane %v508, 1
        %v510 = vadd.f32 %v508, %v509
        %s511 = vtos %v510
        %v512 = vld [vmem:[%s339] sm:$0x1]
        %v513 = vstv %s511
        %v514 = vadd.f32 %v512, %v513
        %vm515 = vcmask 0
        %516 = vst.msk [vmem:[%s339] sm:$0x1] %vm515, %v514
        %s517 = sand.u32 %s167, 1
        %s518 = scalar_lea.sflag [#allocation3], %s517
        %s519 = sand.u32 %s167, 1
        %s520 = smul.addr %s519, 16
        %s521 = scalar_lea.vmem [#allocation2], %s520
        %p522 = scmp.lt.s32.totalorder %s25, 1
        %s523 = scalar_select %p522, %s25, 1
        %s524 = scalar_lea.vmem %s6, %s523
        // Predicated region
        $region45: #{tpu_custom_call.1} parent=39 // pred_check
          %p525 = pneg %p177
        $region46: #{tpu_custom_call.1} parent=39 // pred_check_branch
          %527 = sbr.rel (%p525) target = $region48
        $region47: #{tpu_custom_call.1} parent=39 // pred_region
          %s528 = smul.u32 2, %s26
          %s530 = ssub.s32 256, 256
          %531 = vsyncadd %s518, %s530
          %s532 = smul.addr %s25, 2
          %s533 = sadd.s32 %s528, %s532
          %s534 = smul.addr %s533, 128
          %s535 = scalar_lea.hbm %s5, %s534
          %s536 = sshll.u32 %s521, 4
          %s537 = int_to_ptr.vmem [resolvable:$true] %s536
          %542 = dma.vmem_to_hbm [thread:$0]  %s537, 256, %s535, %s518, 128, 128, 8
        $region48: #{tpu_custom_call.1} parent=39 // pred_fallthru
          _
        // Predicated region
        $region49: #{tpu_custom_call.1} parent=39 // pred_check
          %p543 = pneg %p203
        $region50: #{tpu_custom_call.1} parent=39 // pred_check_branch
          %545 = sbr.rel (%p543) target = $region52
        $region51: #{tpu_custom_call.1} parent=39 // pred_region
          _
        $region52: #{tpu_custom_call.1} parent=39 // pred_fallthru
          _
      $region40: #{tpu_custom_call.1} parent=5 // pred_fallthru
        _
      %p546 = scmp.le.s32.totalorder 2, %s16
      // Predicated region
      $region53: #{tpu_custom_call.1} parent=5 // pred_check
        %p547 = pneg %p546
      $region54: #{tpu_custom_call.1} parent=5 // pred_check_branch
        %549 = sbr.rel (%p547) target = $region56
      $region55: #{tpu_custom_call.1} parent=5 // pred_region
        %s550 = ssub.s32 %s16, 2
        // Predicated region
        $region57: #{tpu_custom_call.1} parent=55 // pred_check
          %p551 = pneg %p183
        $region58: #{tpu_custom_call.1} parent=55 // pred_check_branch
          %553 = sbr.rel (%p551) target = $region60
        $region59: #{tpu_custom_call.1} parent=55 // pred_region
          %s554 = sand.u32 %s168, 1
          %s555 = scalar_lea.sflag [#allocation3], %s554
          %s556 = sand.u32 %s168, 1
          %s557 = smul.addr %s556, 16
          %s558 = scalar_lea.vmem [#allocation2], %s557
          %559 = dma.done %s555, 256
        $region60: #{tpu_custom_call.1} parent=55 // pred_fallthru
          _
        // Predicated region
        $region61: #{tpu_custom_call.1} parent=55 // pred_check
          %p560 = pneg %p209
        $region62: #{tpu_custom_call.1} parent=55 // pred_check_branch
          %562 = sbr.rel (%p560) target = $region64
        $region63: #{tpu_custom_call.1} parent=55 // pred_region
          %p563 = scmp.lt.s32.totalorder %s27, 1
          %s564 = scalar_select %p563, %s27, 1
          %s565 = scalar_lea.vmem %s6, %s564
        $region64: #{tpu_custom_call.1} parent=55 // pred_fallthru
          _
      $region56: #{tpu_custom_call.1} parent=5 // pred_fallthru
        _
    $region6: #{tpu_custom_call.1} parent=1 // loop_footer
      %s20 = sadd.s32 1, %s16
    $region7: #{tpu_custom_call.1} parent=1 // loop_footer_branch
      %15 = sbr.rel target = $region3
    $region8: #{tpu_custom_call.1} parent=1 // loop_exit
      _
    %566 = vsyncpa [#allocation3], 1
    %s567 = scalar_lea.sflag [#allocation3], 1
    %568 = vsyncpa %s567, 1

</llo_original>
